<compile_context>
chip_gen: v7x
topology: tpu7x:2x2x1
jax: 0.10.0
libtpu: 0.0.40
codegen_flags: <defaults>
</compile_context>

<pallas_src>
import jax
import jax.numpy as jnp
from jax.experimental import pallas as pl
from jax.experimental.pallas import tpu as pltpu

BN_EPS = 1e-5
NORM_EPS = 1e-12


def _mlp_kernel(x_ref,
                w1_ref, g1_ref, be1_ref,
                w2_ref, g2_ref, be2_ref,
                w3_ref, g3_ref, be3_ref,
                w4_ref,
                l1_ref, l2_ref, l3_ref, z_ref):
    """Whole forward pass; compute in lane-dense (features, batch) layout,
    inputs/outputs in native (batch, features) layout."""
    n = x_ref.shape[0]                                  # static batch size
    n_inv = jnp.float32(1.0 / n)

    def bn_stats(h):
        s = jnp.sum(h, axis=1, keepdims=True)           # (C, 1) lane reduce (XLU)
        ss = jnp.sum(h * h, axis=1, keepdims=True)
        mean = s * n_inv
        # Biased (training-mode) variance; clamp f32 cancellation at 0 so
        # rsqrt(var + eps) can never see a negative argument.
        var = jnp.maximum(ss * n_inv - mean * mean, 0.0)
        return mean, var

    def bn_relu(h, gamma, beta):
        mean, var = bn_stats(h)
        scale = gamma * jax.lax.rsqrt(var + BN_EPS)
        shift = beta - mean * scale
        return jnp.maximum(h * scale + shift, 0.0)

    # One in-kernel transpose of x to the lane-dense compute layout.
    x_t = x_ref[...].T                                   # (input_dim, n)

    a1 = bn_relu(jnp.dot(w1_ref[...], x_t, preferred_element_type=jnp.float32),
                 g1_ref[...], be1_ref[...])              # (32, n)
    l1_ref[...] = a1.T                                   # store native (n, 32)

    a2 = bn_relu(jnp.dot(w2_ref[...], a1, preferred_element_type=jnp.float32),
                 g2_ref[...], be2_ref[...])              # (16, n)
    l2_ref[...] = a2.T

    a3 = bn_relu(jnp.dot(w3_ref[...], a2, preferred_element_type=jnp.float32),
                 g3_ref[...], be3_ref[...])              # (8, n)
    l3_ref[...] = a3.T

    # Final block: Linear(8, feat) -> BN(affine=False) -> row-wise L2 normalize.
    h4 = jnp.dot(w4_ref[...], a3, preferred_element_type=jnp.float32)  # (feat, n)
    mean, var = bn_stats(h4)
    h4_hat = (h4 - mean) * jax.lax.rsqrt(var + BN_EPS)
    sumsq = jnp.sum(h4_hat * h4_hat, axis=0, keepdims=True)            # (1, n)
    z = h4_hat * jax.lax.rsqrt(jnp.maximum(sumsq, NORM_EPS * NORM_EPS))
    z_ref[...] = z.T                                     # store native (n, feat)


def kaiming_normal(key, out_features, in_features):
    # nn.init.kaiming_normal_ default: fan_in mode, leaky_relu(a=0) -> gain=sqrt(2)
    std = (2.0 / in_features) ** 0.5
    return std * jax.random.normal(key, (out_features, in_features), jnp.float32)


def init_params(key, input_dim, feature_dim):
    dims = [input_dim, 32, 16, 8, feature_dim]
    keys = jax.random.split(key, 4)
    params = {}
    for i in range(4):
        # Torch layout (out_features, in_features); kernel computes W @ x_t.
        params[f"w{i+1}"] = kaiming_normal(keys[i], dims[i + 1], dims[i])
    # BN affine params for layers 1-3 (layer 4 BN has affine=False), as columns.
    for i, d in enumerate([32, 16, 8], start=1):
        params[f"g{i}"] = jnp.ones((d, 1), jnp.float32)
        params[f"be{i}"] = jnp.zeros((d, 1), jnp.float32)
    # Linear biases: zero-initialized by the module and exactly cancelled by
    # training-mode BatchNorm, so they are omitted entirely.
    return params


def _vmem_cap_bytes():
    """Generation-aware VMEM ceiling (physical capacity minus headroom)."""
    try:
        cap = int(pltpu.get_tpu_info().vmem_capacity_bytes)   # 128 MiB v5e/v6e, 64 MiB v7x
    except Exception:
        cap = 64 << 20                                        # conservative fallback (v7x)
    return max(cap - (8 << 20), 16 << 20)


@jax.jit
def modified_network_forward(x, params):
    n, input_dim = x.shape
    feature_dim = params["w4"].shape[0]

    vmem = pl.BlockSpec(memory_space=pltpu.MemorySpace.VMEM)
    operands = (x.astype(jnp.float32),
                params["w1"], params["g1"], params["be1"],
                params["w2"], params["g2"], params["be2"],
                params["w3"], params["g3"], params["be3"],
                params["w4"])

    out_shape = (
        jax.ShapeDtypeStruct((n, 32), jnp.float32),            # layer1_output
        jax.ShapeDtypeStruct((n, 16), jnp.float32),            # layer2_output
        jax.ShapeDtypeStruct((n, 8), jnp.float32),             # layer3_output
        jax.ShapeDtypeStruct((n, feature_dim), jnp.float32),   # normalized_output
    )

    # Scoped-VMEM limit sized from the resident I/O footprint (x + 4 outputs)
    # with room for the transposed working copies, capped below this
    # generation's physical capacity.
    io_bytes = 4 * n * (input_dim + 32 + 16 + 8 + feature_dim)
    vmem_limit = int(min(max(4 * io_bytes + (8 << 20), 32 << 20), _vmem_cap_bytes()))

    l1, l2, l3, z = pl.pallas_call(
        _mlp_kernel,
        out_shape=out_shape,
        in_specs=[vmem] * len(operands),
        out_specs=(vmem,) * len(out_shape),
        compiler_params=pltpu.CompilerParams(vmem_limit_bytes=vmem_limit),
    )(*operands)

    # TODO(synk): batches whose footprint exceeds the per-generation VMEM cap
    # need a multi-pass streamed design (per-layer stats pass, then a
    # normalize/store pass; >=512-lane batch tiles; batch axis "parallel" for
    # v7x's 2 TensorCores) -- training-mode BN couples every row, so a
    # single-pass batch-tiled grid cannot reproduce the exact semantics.

    outputs = {
        "layer1_output": l1,
        "layer2_output": l2,
        "layer3_output": l3,
        "normalized_output": z,
    }
    return z, outputs


def _reference_forward(x, params):
    """Pure-JAX reference (mirrors the PyTorch module in training mode)."""
    def bn(h, gamma=None, beta=None):
        mean = jnp.mean(h, axis=0, keepdims=True)
        var = jnp.mean((h - mean) ** 2, axis=0, keepdims=True)
        hh = (h - mean) / jnp.sqrt(var + BN_EPS)
        if gamma is not None:
            hh = hh * gamma.reshape(1, -1) + beta.reshape(1, -1)
        return hh

    h = x @ params["w1"].T
    l1 = jnp.maximum(bn(h, params["g1"], params["be1"]), 0.0)
    h = l1 @ params["w2"].T
    l2 = jnp.maximum(bn(h, params["g2"], params["be2"]), 0.0)
    h = l2 @ params["w3"].T
    l3 = jnp.maximum(bn(h, params["g3"], params["be3"]), 0.0)
    h = l3 @ params["w4"].T
    h = bn(h)
    norm = jnp.maximum(jnp.linalg.norm(h, axis=1, keepdims=True), NORM_EPS)
    return h / norm, l1, l2, l3


if __name__ == "__main__":
    INPUT_DIM = 32
    FEATURE_DIM = 8
    BATCH = 16

    key = jax.random.PRNGKey(0)
    k_param, k_x = jax.random.split(key)

    params = init_params(k_param, INPUT_DIM, FEATURE_DIM)
    x = jax.random.normal(k_x, (BATCH, INPUT_DIM), jnp.float32)

    z, outputs = modified_network_forward(x, params)
    jax.block_until_ready(z)
    jax.block_until_ready(outputs)

    # Shape sanity.
    assert z.shape == (BATCH, FEATURE_DIM)
    assert outputs["layer1_output"].shape == (BATCH, 32)
    assert outputs["layer2_output"].shape == (BATCH, 16)
    assert outputs["layer3_output"].shape == (BATCH, 8)

    # Unit-norm rows.
    row_norms = jnp.linalg.norm(z, axis=1)
    assert bool(jnp.all(jnp.abs(row_norms - 1.0) < 1e-4))

    # Numerical check against the pure-JAX reference.
    z_ref, l1_ref, l2_ref, l3_ref = _reference_forward(x, params)
    for got, want in ((z, z_ref),
                      (outputs["layer1_output"], l1_ref),
                      (outputs["layer2_output"], l2_ref),
                      (outputs["layer3_output"], l3_ref)):
        assert bool(jnp.all(jnp.abs(got - want) < 1e-4)), "mismatch vs reference"

    print("KERNEL_OK")
</pallas_src>

<mosaic_0001>
module attributes {stable_mosaic.version = 11 : i64} {
  func.func @_mlp_kernel(%arg0: memref<16x32xf32, #tpu.memory_space<vmem>>, %arg1: memref<32x32xf32, #tpu.memory_space<vmem>>, %arg2: memref<32x1xf32, #tpu.memory_space<vmem>>, %arg3: memref<32x1xf32, #tpu.memory_space<vmem>>, %arg4: memref<16x32xf32, #tpu.memory_space<vmem>>, %arg5: memref<16x1xf32, #tpu.memory_space<vmem>>, %arg6: memref<16x1xf32, #tpu.memory_space<vmem>>, %arg7: memref<8x16xf32, #tpu.memory_space<vmem>>, %arg8: memref<8x1xf32, #tpu.memory_space<vmem>>, %arg9: memref<8x1xf32, #tpu.memory_space<vmem>>, %arg10: memref<8x8xf32, #tpu.memory_space<vmem>>, %arg11: memref<16x32xf32, #tpu.memory_space<vmem>>, %arg12: memref<16x16xf32, #tpu.memory_space<vmem>>, %arg13: memref<16x8xf32, #tpu.memory_space<vmem>>, %arg14: memref<16x8xf32, #tpu.memory_space<vmem>>) attributes {dimension_semantics = [], scalar_prefetch = 0 : i64, scratch_operands = 0 : i64, tpu.core_type = #tpu.core_type<tc>} {
    %c0 = arith.constant 0 : index
    %c0_0 = arith.constant 0 : index
    %0 = vector.load %arg0[%c0, %c0_0] : memref<16x32xf32, #tpu.memory_space<vmem>>, vector<16x32xf32>
    %1 = tpu.transpose %0, [1, 0] : vector<16x32xf32> -> vector<32x16xf32>
    %c0_1 = arith.constant 0 : index
    %c0_2 = arith.constant 0 : index
    %2 = vector.load %arg1[%c0_1, %c0_2] : memref<32x32xf32, #tpu.memory_space<vmem>>, vector<32x32xf32>
    %cst = arith.constant dense<0.000000e+00> : vector<32x16xf32>
    %3 = tpu.matmul %2, %1, %cst {dimension_numbers = #tpu.dot_dimension_numbers<[1], [0], [0], [1], [0, 0, 1, 1], [], []>} : vector<32x32xf32>, vector<32x16xf32>, vector<32x16xf32> -> vector<32x16xf32>
    %c0_3 = arith.constant 0 : index
    %c0_4 = arith.constant 0 : index
    %4 = vector.load %arg2[%c0_3, %c0_4] : memref<32x1xf32, #tpu.memory_space<vmem>>, vector<32x1xf32>
    %c0_5 = arith.constant 0 : index
    %c0_6 = arith.constant 0 : index
    %5 = vector.load %arg3[%c0_5, %c0_6] : memref<32x1xf32, #tpu.memory_space<vmem>>, vector<32x1xf32>
    %cst_7 = arith.constant dense<0.000000e+00> : vector<32xf32>
    %6 = vector.multi_reduction <add>, %3, %cst_7 [1] : vector<32x16xf32> to vector<32xf32>
    %7 = vector.shape_cast %6 : vector<32xf32> to vector<32x1xf32>
    %8 = arith.mulf %3, %3 : vector<32x16xf32>
    %cst_8 = arith.constant dense<0.000000e+00> : vector<32xf32>
    %9 = vector.multi_reduction <add>, %8, %cst_8 [1] : vector<32x16xf32> to vector<32xf32>
    %10 = vector.shape_cast %9 : vector<32xf32> to vector<32x1xf32>
    %cst_9 = arith.constant 6.250000e-02 : f32
    %11 = vector.broadcast %cst_9 : f32 to vector<32x1xf32>
    %12 = arith.mulf %7, %11 : vector<32x1xf32>
    %cst_10 = arith.constant 6.250000e-02 : f32
    %13 = vector.broadcast %cst_10 : f32 to vector<32x1xf32>
    %14 = arith.mulf %10, %13 : vector<32x1xf32>
    %15 = arith.mulf %12, %12 : vector<32x1xf32>
    %16 = arith.subf %14, %15 : vector<32x1xf32>
    %cst_11 = arith.constant 0.000000e+00 : f32
    %17 = vector.broadcast %cst_11 : f32 to vector<32x1xf32>
    %18 = arith.maximumf %16, %17 : vector<32x1xf32>
    %cst_12 = arith.constant 9.99999974E-6 : f32
    %19 = vector.broadcast %cst_12 : f32 to vector<32x1xf32>
    %20 = arith.addf %18, %19 : vector<32x1xf32>
    %21 = math.rsqrt %20 : vector<32x1xf32>
    %22 = arith.mulf %4, %21 : vector<32x1xf32>
    %23 = arith.mulf %12, %22 : vector<32x1xf32>
    %24 = arith.subf %5, %23 : vector<32x1xf32>
    %25 = vector.broadcast %22 : vector<32x1xf32> to vector<32x16xf32>
    %26 = arith.mulf %3, %25 : vector<32x16xf32>
    %27 = vector.broadcast %24 : vector<32x1xf32> to vector<32x16xf32>
    %28 = arith.addf %26, %27 : vector<32x16xf32>
    %cst_13 = arith.constant 0.000000e+00 : f32
    %29 = vector.broadcast %cst_13 : f32 to vector<32x16xf32>
    %30 = arith.maximumf %28, %29 : vector<32x16xf32>
    %31 = tpu.transpose %30, [1, 0] : vector<32x16xf32> -> vector<16x32xf32>
    %c0_14 = arith.constant 0 : index
    %c0_15 = arith.constant 0 : index
    %32 = vector.load %arg11[%c0_14, %c0_15] : memref<16x32xf32, #tpu.memory_space<vmem>>, vector<16x32xf32>
    tpu.vector_store %arg11[%c0_14, %c0_15], %31 {strides = array<i32>} : memref<16x32xf32, #tpu.memory_space<vmem>>, vector<16x32xf32>,
    %c0_16 = arith.constant 0 : index
    %c0_17 = arith.constant 0 : index
    %33 = vector.load %arg4[%c0_16, %c0_17] : memref<16x32xf32, #tpu.memory_space<vmem>>, vector<16x32xf32>
    %cst_18 = arith.constant dense<0.000000e+00> : vector<16x16xf32>
    %34 = tpu.matmul %33, %30, %cst_18 {dimension_numbers = #tpu.dot_dimension_numbers<[1], [0], [0], [1], [0, 0, 1, 1], [], []>} : vector<16x32xf32>, vector<32x16xf32>, vector<16x16xf32> -> vector<16x16xf32>
    %c0_19 = arith.constant 0 : index
    %c0_20 = arith.constant 0 : index
    %35 = vector.load %arg5[%c0_19, %c0_20] : memref<16x1xf32, #tpu.memory_space<vmem>>, vector<16x1xf32>
    %c0_21 = arith.constant 0 : index
    %c0_22 = arith.constant 0 : index
    %36 = vector.load %arg6[%c0_21, %c0_22] : memref<16x1xf32, #tpu.memory_space<vmem>>, vector<16x1xf32>
    %cst_23 = arith.constant dense<0.000000e+00> : vector<16xf32>
    %37 = vector.multi_reduction <add>, %34, %cst_23 [1] : vector<16x16xf32> to vector<16xf32>
    %38 = vector.shape_cast %37 : vector<16xf32> to vector<16x1xf32>
    %39 = arith.mulf %34, %34 : vector<16x16xf32>
    %cst_24 = arith.constant dense<0.000000e+00> : vector<16xf32>
    %40 = vector.multi_reduction <add>, %39, %cst_24 [1] : vector<16x16xf32> to vector<16xf32>
    %41 = vector.shape_cast %40 : vector<16xf32> to vector<16x1xf32>
    %cst_25 = arith.constant 6.250000e-02 : f32
    %42 = vector.broadcast %cst_25 : f32 to vector<16x1xf32>
    %43 = arith.mulf %38, %42 : vector<16x1xf32>
    %cst_26 = arith.constant 6.250000e-02 : f32
    %44 = vector.broadcast %cst_26 : f32 to vector<16x1xf32>
    %45 = arith.mulf %41, %44 : vector<16x1xf32>
    %46 = arith.mulf %43, %43 : vector<16x1xf32>
    %47 = arith.subf %45, %46 : vector<16x1xf32>
    %cst_27 = arith.constant 0.000000e+00 : f32
    %48 = vector.broadcast %cst_27 : f32 to vector<16x1xf32>
    %49 = arith.maximumf %47, %48 : vector<16x1xf32>
    %cst_28 = arith.constant 9.99999974E-6 : f32
    %50 = vector.broadcast %cst_28 : f32 to vector<16x1xf32>
    %51 = arith.addf %49, %50 : vector<16x1xf32>
    %52 = math.rsqrt %51 : vector<16x1xf32>
    %53 = arith.mulf %35, %52 : vector<16x1xf32>
    %54 = arith.mulf %43, %53 : vector<16x1xf32>
    %55 = arith.subf %36, %54 : vector<16x1xf32>
    %56 = vector.broadcast %53 : vector<16x1xf32> to vector<16x16xf32>
    %57 = arith.mulf %34, %56 : vector<16x16xf32>
    %58 = vector.broadcast %55 : vector<16x1xf32> to vector<16x16xf32>
    %59 = arith.addf %57, %58 : vector<16x16xf32>
    %cst_29 = arith.constant 0.000000e+00 : f32
    %60 = vector.broadcast %cst_29 : f32 to vector<16x16xf32>
    %61 = arith.maximumf %59, %60 : vector<16x16xf32>
    %62 = tpu.transpose %61, [1, 0] : vector<16x16xf32> -> vector<16x16xf32>
    %c0_30 = arith.constant 0 : index
    %c0_31 = arith.constant 0 : index
    %63 = vector.load %arg12[%c0_30, %c0_31] : memref<16x16xf32, #tpu.memory_space<vmem>>, vector<16x16xf32>
    tpu.vector_store %arg12[%c0_30, %c0_31], %62 {strides = array<i32>} : memref<16x16xf32, #tpu.memory_space<vmem>>, vector<16x16xf32>,
    %c0_32 = arith.constant 0 : index
    %c0_33 = arith.constant 0 : index
    %64 = vector.load %arg7[%c0_32, %c0_33] : memref<8x16xf32, #tpu.memory_space<vmem>>, vector<8x16xf32>
    %cst_34 = arith.constant dense<0.000000e+00> : vector<8x16xf32>
    %65 = tpu.matmul %64, %61, %cst_34 {dimension_numbers = #tpu.dot_dimension_numbers<[1], [0], [0], [1], [0, 0, 1, 1], [], []>} : vector<8x16xf32>, vector<16x16xf32>, vector<8x16xf32> -> vector<8x16xf32>
    %c0_35 = arith.constant 0 : index
    %c0_36 = arith.constant 0 : index
    %66 = vector.load %arg8[%c0_35, %c0_36] : memref<8x1xf32, #tpu.memory_space<vmem>>, vector<8x1xf32>
    %c0_37 = arith.constant 0 : index
    %c0_38 = arith.constant 0 : index
    %67 = vector.load %arg9[%c0_37, %c0_38] : memref<8x1xf32, #tpu.memory_space<vmem>>, vector<8x1xf32>
    %cst_39 = arith.constant dense<0.000000e+00> : vector<8xf32>
    %68 = vector.multi_reduction <add>, %65, %cst_39 [1] : vector<8x16xf32> to vector<8xf32>
    %69 = vector.shape_cast %68 : vector<8xf32> to vector<8x1xf32>
    %70 = arith.mulf %65, %65 : vector<8x16xf32>
    %cst_40 = arith.constant dense<0.000000e+00> : vector<8xf32>
    %71 = vector.multi_reduction <add>, %70, %cst_40 [1] : vector<8x16xf32> to vector<8xf32>
    %72 = vector.shape_cast %71 : vector<8xf32> to vector<8x1xf32>
    %cst_41 = arith.constant 6.250000e-02 : f32
    %73 = vector.broadcast %cst_41 : f32 to vector<8x1xf32>
    %74 = arith.mulf %69, %73 : vector<8x1xf32>
    %cst_42 = arith.constant 6.250000e-02 : f32
    %75 = vector.broadcast %cst_42 : f32 to vector<8x1xf32>
    %76 = arith.mulf %72, %75 : vector<8x1xf32>
    %77 = arith.mulf %74, %74 : vector<8x1xf32>
    %78 = arith.subf %76, %77 : vector<8x1xf32>
    %cst_43 = arith.constant 0.000000e+00 : f32
    %79 = vector.broadcast %cst_43 : f32 to vector<8x1xf32>
    %80 = arith.maximumf %78, %79 : vector<8x1xf32>
    %cst_44 = arith.constant 9.99999974E-6 : f32
    %81 = vector.broadcast %cst_44 : f32 to vector<8x1xf32>
    %82 = arith.addf %80, %81 : vector<8x1xf32>
    %83 = math.rsqrt %82 : vector<8x1xf32>
    %84 = arith.mulf %66, %83 : vector<8x1xf32>
    %85 = arith.mulf %74, %84 : vector<8x1xf32>
    %86 = arith.subf %67, %85 : vector<8x1xf32>
    %87 = vector.broadcast %84 : vector<8x1xf32> to vector<8x16xf32>
    %88 = arith.mulf %65, %87 : vector<8x16xf32>
    %89 = vector.broadcast %86 : vector<8x1xf32> to vector<8x16xf32>
    %90 = arith.addf %88, %89 : vector<8x16xf32>
    %cst_45 = arith.constant 0.000000e+00 : f32
    %91 = vector.broadcast %cst_45 : f32 to vector<8x16xf32>
    %92 = arith.maximumf %90, %91 : vector<8x16xf32>
    %93 = tpu.transpose %92, [1, 0] : vector<8x16xf32> -> vector<16x8xf32>
    %c0_46 = arith.constant 0 : index
    %c0_47 = arith.constant 0 : index
    %94 = vector.load %arg13[%c0_46, %c0_47] : memref<16x8xf32, #tpu.memory_space<vmem>>, vector<16x8xf32>
    tpu.vector_store %arg13[%c0_46, %c0_47], %93 {strides = array<i32>} : memref<16x8xf32, #tpu.memory_space<vmem>>, vector<16x8xf32>,
    %c0_48 = arith.constant 0 : index
    %c0_49 = arith.constant 0 : index
    %95 = vector.load %arg10[%c0_48, %c0_49] : memref<8x8xf32, #tpu.memory_space<vmem>>, vector<8x8xf32>
    %cst_50 = arith.constant dense<0.000000e+00> : vector<8x16xf32>
    %96 = tpu.matmul %95, %92, %cst_50 {dimension_numbers = #tpu.dot_dimension_numbers<[1], [0], [0], [1], [0, 0, 1, 1], [], []>} : vector<8x8xf32>, vector<8x16xf32>, vector<8x16xf32> -> vector<8x16xf32>
    %cst_51 = arith.constant dense<0.000000e+00> : vector<8xf32>
    %97 = vector.multi_reduction <add>, %96, %cst_51 [1] : vector<8x16xf32> to vector<8xf32>
    %98 = vector.shape_cast %97 : vector<8xf32> to vector<8x1xf32>
    %99 = arith.mulf %96, %96 : vector<8x16xf32>
    %cst_52 = arith.constant dense<0.000000e+00> : vector<8xf32>
    %100 = vector.multi_reduction <add>, %99, %cst_52 [1] : vector<8x16xf32> to vector<8xf32>
    %101 = vector.shape_cast %100 : vector<8xf32> to vector<8x1xf32>
    %cst_53 = arith.constant 6.250000e-02 : f32
    %102 = vector.broadcast %cst_53 : f32 to vector<8x1xf32>
    %103 = arith.mulf %98, %102 : vector<8x1xf32>
    %cst_54 = arith.constant 6.250000e-02 : f32
    %104 = vector.broadcast %cst_54 : f32 to vector<8x1xf32>
    %105 = arith.mulf %101, %104 : vector<8x1xf32>
    %106 = arith.mulf %103, %103 : vector<8x1xf32>
    %107 = arith.subf %105, %106 : vector<8x1xf32>
    %cst_55 = arith.constant 0.000000e+00 : f32
    %108 = vector.broadcast %cst_55 : f32 to vector<8x1xf32>
    %109 = arith.maximumf %107, %108 : vector<8x1xf32>
    %110 = vector.broadcast %103 : vector<8x1xf32> to vector<8x16xf32>
    %111 = arith.subf %96, %110 : vector<8x16xf32>
    %cst_56 = arith.constant 9.99999974E-6 : f32
    %112 = vector.broadcast %cst_56 : f32 to vector<8x1xf32>
    %113 = arith.addf %109, %112 : vector<8x1xf32>
    %114 = math.rsqrt %113 : vector<8x1xf32>
    %115 = vector.broadcast %114 : vector<8x1xf32> to vector<8x16xf32>
    %116 = arith.mulf %111, %115 : vector<8x16xf32>
    %117 = arith.mulf %116, %116 : vector<8x16xf32>
    %cst_57 = arith.constant dense<0.000000e+00> : vector<16xf32>
    %118 = vector.multi_reduction <add>, %117, %cst_57 [0] : vector<8x16xf32> to vector<16xf32>
    %119 = vector.shape_cast %118 : vector<16xf32> to vector<1x16xf32>
    %cst_58 = arith.constant 1.000000e-24 : f32
    %120 = vector.broadcast %cst_58 : f32 to vector<1x16xf32>
    %121 = arith.maximumf %119, %120 : vector<1x16xf32>
    %122 = math.rsqrt %121 : vector<1x16xf32>
    %123 = vector.broadcast %122 : vector<1x16xf32> to vector<8x16xf32>
    %124 = arith.mulf %116, %123 : vector<8x16xf32>
    %125 = tpu.transpose %124, [1, 0] : vector<8x16xf32> -> vector<16x8xf32>
    %c0_59 = arith.constant 0 : index
    %c0_60 = arith.constant 0 : index
    %126 = vector.load %arg14[%c0_59, %c0_60] : memref<16x8xf32, #tpu.memory_space<vmem>>, vector<16x8xf32>
    tpu.vector_store %arg14[%c0_59, %c0_60], %125 {strides = array<i32>} : memref<16x8xf32, #tpu.memory_space<vmem>>, vector<16x8xf32>,
    return
  }
}

</mosaic_0001>

<llo_original>
// kernel: modified_network_forward.1
$region0: #{modified_network_forward.1}
  #allocation0 [shape = 'u32[]', space=smem, size = 0x4, offset = 0x4, fixed_abs, tag = 'smem constant byte address 0x4 - core index']
  #allocation1 [shape = 'u32[144,128]{1,0:T(1,128)}', space=vmem, size = 0x12000, scoped, tag = 'internal scratch']
  %s0 = inlined_call_operand.vmem [shape: f32[16,32], index: 0, kind: input, shape index: {}]
  %s1 = inlined_call_operand.vmem [shape: f32[32,32], index: 1, kind: input, shape index: {}]
  %s2 = inlined_call_operand.vmem [shape: f32[32,1], index: 2, kind: input, shape index: {}]
  %s3 = inlined_call_operand.vmem [shape: f32[32,1], index: 3, kind: input, shape index: {}]
  %s4 = inlined_call_operand.vmem [shape: f32[16,32], index: 4, kind: input, shape index: {}]
  %s5 = inlined_call_operand.vmem [shape: f32[16,1], index: 5, kind: input, shape index: {}]
  %s6 = inlined_call_operand.vmem [shape: f32[16,1], index: 6, kind: input, shape index: {}]
  %s7 = inlined_call_operand.vmem [shape: f32[8,16], index: 7, kind: input, shape index: {}]
  %s8 = inlined_call_operand.vmem [shape: f32[8,1], index: 8, kind: input, shape index: {}]
  %s9 = inlined_call_operand.vmem [shape: f32[8,1], index: 9, kind: input, shape index: {}]
  %s10 = inlined_call_operand.vmem [shape: f32[8,8], index: 10, kind: input, shape index: {}]
  %s11 = inlined_call_operand.hbm [shape: f32[16,32], index: 11, kind: output, shape index: {0}]
  %s12 = inlined_call_operand.hbm [shape: f32[16,16], index: 12, kind: output, shape index: {1}]
  %s13 = inlined_call_operand.vmem [shape: f32[16,8], index: 13, kind: output, shape index: {2}]
  %s14 = inlined_call_operand.vmem [shape: f32[16,8], index: 14, kind: output, shape index: {3}]
  %15 = xla_tuple %s11, %s12, %s13, %s14
  %s16 = sld [smem:[#allocation0]]
  $region78: #{modified_network_forward.1} parent=0
    _
  %s18 = ssub.s32 1, %s16
  %s19 = scalar_select 0, %s18, %s16
  $region1: #{modified_network_forward.1} parent=0
    #allocation2 [shape = 'u8[8192]{0}', space=vmem, size = 0x2000, scoped, tag = 'output window, operand 0, single buffered']
    #allocation3 [shape = 's32[1]{0}', space=sflag, size = 0x4, scoped, tag = 'scoped memory for modified_network_forward.1']
    #allocation4 [shape = 'u8[8192]{0}', space=vmem, size = 0x2000, scoped, tag = 'output window, operand 1, single buffered']
    #allocation5 [shape = 's32[1]{0}', space=sflag, size = 0x4, scoped, tag = 'scoped memory for modified_network_forward.1']
    %20 = vsyncpa [#allocation3], 0
    %21 = vsyncpa [#allocation5], 0
    // Predicated region
    $region2: #{modified_network_forward.1} parent=1 // pred_check
      _
    $region3: #{modified_network_forward.1} parent=1 // pred_check_branch
      %23 = sbr.rel (0) target = $region5
    $region4: #{modified_network_forward.1} parent=1 // pred_region
      _
    $region5: #{modified_network_forward.1} parent=1 // pred_fallthru
      _
    // Predicated region
    $region6: #{modified_network_forward.1} parent=1 // pred_check
      _
    $region7: #{modified_network_forward.1} parent=1 // pred_check_branch
      %25 = sbr.rel (0) target = $region9
    $region8: #{modified_network_forward.1} parent=1 // pred_region
      _
    $region9: #{modified_network_forward.1} parent=1 // pred_fallthru
      _
    // Predicated region
    $region10: #{modified_network_forward.1} parent=1 // pred_check
      _
    $region11: #{modified_network_forward.1} parent=1 // pred_check_branch
      %27 = sbr.rel (0) target = $region13
    $region12: #{modified_network_forward.1} parent=1 // pred_region
      _
    $region13: #{modified_network_forward.1} parent=1 // pred_fallthru
      _
    // Predicated region
    $region14: #{modified_network_forward.1} parent=1 // pred_check
      _
    $region15: #{modified_network_forward.1} parent=1 // pred_check_branch
      %29 = sbr.rel (0) target = $region17
    $region16: #{modified_network_forward.1} parent=1 // pred_region
      _
    $region17: #{modified_network_forward.1} parent=1 // pred_fallthru
      _
    // Predicated region
    $region18: #{modified_network_forward.1} parent=1 // pred_check
      _
    $region19: #{modified_network_forward.1} parent=1 // pred_check_branch
      %31 = sbr.rel (0) target = $region21
    $region20: #{modified_network_forward.1} parent=1 // pred_region
      _
    $region21: #{modified_network_forward.1} parent=1 // pred_fallthru
      _
    // Predicated region
    $region22: #{modified_network_forward.1} parent=1 // pred_check
      _
    $region23: #{modified_network_forward.1} parent=1 // pred_check_branch
      %33 = sbr.rel (0) target = $region25
    $region24: #{modified_network_forward.1} parent=1 // pred_region
      _
    $region25: #{modified_network_forward.1} parent=1 // pred_fallthru
      _
    // Predicated region
    $region26: #{modified_network_forward.1} parent=1 // pred_check
      _
    $region27: #{modified_network_forward.1} parent=1 // pred_check_branch
      %35 = sbr.rel (0) target = $region29
    $region28: #{modified_network_forward.1} parent=1 // pred_region
      _
    $region29: #{modified_network_forward.1} parent=1 // pred_fallthru
      _
    // Predicated region
    $region30: #{modified_network_forward.1} parent=1 // pred_check
      _
    $region31: #{modified_network_forward.1} parent=1 // pred_check_branch
      %37 = sbr.rel (0) target = $region33
    $region32: #{modified_network_forward.1} parent=1 // pred_region
      _
    $region33: #{modified_network_forward.1} parent=1 // pred_fallthru
      _
    // Predicated region
    $region34: #{modified_network_forward.1} parent=1 // pred_check
      _
    $region35: #{modified_network_forward.1} parent=1 // pred_check_branch
      %39 = sbr.rel (0) target = $region37
    $region36: #{modified_network_forward.1} parent=1 // pred_region
      _
    $region37: #{modified_network_forward.1} parent=1 // pred_fallthru
      _
    // Predicated region
    $region38: #{modified_network_forward.1} parent=1 // pred_check
      _
    $region39: #{modified_network_forward.1} parent=1 // pred_check_branch
      %41 = sbr.rel (0) target = $region41
    $region40: #{modified_network_forward.1} parent=1 // pred_region
      _
    $region41: #{modified_network_forward.1} parent=1 // pred_fallthru
      _
    // Predicated region
    $region42: #{modified_network_forward.1} parent=1 // pred_check
      _
    $region43: #{modified_network_forward.1} parent=1 // pred_check_branch
      %43 = sbr.rel (0) target = $region45
    $region44: #{modified_network_forward.1} parent=1 // pred_region
      _
    $region45: #{modified_network_forward.1} parent=1 // pred_fallthru
      _
    %v44 = vld [vmem:[%s0] sm:$0xff]
    %v45 = vld [vmem:[%s0 + $0x8] sm:$0xff]
    %v46 = vld [vmem:[%s1] sm:$0xff]
    %v47 = vld [vmem:[%s1 + $0x8] sm:$0xff]
    %v48 = vld [vmem:[%s1 + $0x10] sm:$0xff]
    %v49 = vld [vmem:[%s1 + $0x18] sm:$0xff]
    %vm50 = vcmask 261120
    %v52 = vsel %vm50, %v46, 0
    %v55 = vsel %vm50, %v47, 0
    %v58 = vsel %vm50, %v48, 0
    %v61 = vsel %vm50, %v49, 0
    %v64 = vsel %vm50, %v44, 0
    %v67 = vsel %vm50, %v45, 0
    %69 = vmatprep.subr.mxu0 0.0
    %70 = vmatpush1.xpose.msra.mxu0 %v64
    %71 = vmatprep.subr.mxu0 0.0
    %72 = vmatpush1.xpose.msra.mxu0 %v67
    %73 = vmatprep.subr.mxu0 0.0
    %74 = vmatpush1.xpose.msra.mxu0 0.0
    %75 = vmatprep.subr.mxu0 0.0
    %76 = vmatpush1.xpose.msra.mxu0 0.0
    %77 = vmatprep.subr.mxu0 0.0
    %78 = vmatpush1.xpose.msra.mxu0 0.0
    %79 = vmatprep.subr.mxu0 0.0
    %80 = vmatpush1.xpose.msra.mxu0 0.0
    %81 = vmatprep.subr.mxu0 0.0
    %82 = vmatpush1.xpose.msra.mxu0 0.0
    %83 = vmatprep.subr.mxu0 0.0
    %84 = vmatpush1.xpose.msra.mxu0 0.0
    %85 = vmatprep.subr.mxu0 0.0
    %86 = vmatpush1.xpose.msra.mxu0 0.0
    %87 = vmatprep.subr.mxu0 0.0
    %88 = vmatpush1.xpose.msra.mxu0 0.0
    %89 = vmatprep.subr.mxu0 0.0
    %90 = vmatpush1.xpose.msra.mxu0 0.0
    %91 = vmatprep.subr.mxu0 0.0
    %92 = vmatpush1.xpose.msra.mxu0 0.0
    %93 = vmatprep.subr.mxu0 0.0
    %94 = vmatpush1.xpose.msra.mxu0 0.0
    %95 = vmatprep.subr.mxu0 0.0
    %96 = vmatpush1.xpose.msra.mxu0 0.0
    %97 = vmatprep.subr.mxu0 0.0
    %98 = vmatpush1.xpose.msra.mxu0 0.0
    %99 = vmatprep.subr.mxu0 0.0
    %100 = vmatpush1.xpose.msra.mxu0 0.0
    %101 = vmatprep.subr.mxu0 0.0
    %102 = vmatpush1.xpose.msra.mxu0 0.0
    %103 = vmatprep.subr.mxu0 0.0
    %104 = vmatpush1.xpose.msra.mxu0 0.0
    %105 = vmatprep.subr.mxu0 0.0
    %106 = vmatpush1.xpose.msra.mxu0 0.0
    %107 = vmatprep.subr.mxu0 0.0
    %108 = vmatpush1.xpose.msra.mxu0 0.0
    %109 = vmatprep.subr.mxu0 0.0
    %110 = vmatpush1.xpose.msra.mxu0 0.0
    %111 = vmatprep.subr.mxu0 0.0
    %112 = vmatpush1.xpose.msra.mxu0 0.0
    %113 = vmatprep.subr.mxu0 0.0
    %114 = vmatpush1.xpose.msra.mxu0 0.0
    %115 = vmatprep.subr.mxu0 0.0
    %116 = vmatpush1.xpose.msra.mxu0 0.0
    %117 = vmatprep.subr.mxu0 0.0
    %118 = vmatpush1.xpose.msra.mxu0 0.0
    %119 = vmatprep.subr.mxu0 0.0
    %120 = vmatpush1.xpose.msra.mxu0 0.0
    %121 = vmatprep.subr.mxu0 0.0
    %122 = vmatpush1.xpose.msra.mxu0 0.0
    %123 = vmatprep.subr.mxu0 0.0
    %124 = vmatpush1.xpose.msra.mxu0 0.0
    %125 = vmatprep.subr.mxu0 0.0
    %126 = vmatpush1.xpose.msra.mxu0 0.0
    %127 = vmatprep.subr.mxu0 0.0
    %128 = vmatpush1.xpose.msra.mxu0 0.0
    %129 = vmatprep.subr.mxu0 0.0
    %130 = vmatpush1.xpose.msra.mxu0 0.0
    %131 = vmatprep.subr.mxu0 0.0
    %132 = vmatpush1.xpose.msra.mxu0 0.0
    %133 = vmatprep.mubr.f32.mxu0 0.0
    %134 = vmatmul.mubr.f32.gmra.mrb[0].mxu0 %v52
    %v135 = vpop.f32.mrb[0].mxu0
    %v136 = vadd.f32 0.0, %v135
    %v137 = vpop.f32.mrb[0].mxu0
    %138 = vmatprep.mubr.f32.mxu0 0.0
    %139 = vmatmul.mubr.f32.gmra.mrb[0].mxu0 %v55
    %v140 = vpop.f32.mrb[0].mxu0
    %v141 = vadd.f32 0.0, %v140
    %v142 = vpop.f32.mrb[0].mxu0
    %143 = vmatprep.mubr.f32.mxu0 0.0
    %144 = vmatmul.mubr.f32.gmra.mrb[0].mxu0 %v58
    %v145 = vpop.f32.mrb[0].mxu0
    %v146 = vadd.f32 0.0, %v145
    %v147 = vpop.f32.mrb[0].mxu0
    %148 = vmatprep.mubr.f32.mxu0 0.0
    %149 = vmatmul.mubr.f32.gmra.mrb[0].mxu0 %v61
    %v150 = vpop.f32.mrb[0].mxu0
    %v151 = vadd.f32 0.0, %v150
    %v152 = vpop.f32.mrb[0].mxu0
    %153 = vdwg.mxu0
    %v154 = vld [vmem:[%s2] sm:$0xff]
    %v155 = vld [vmem:[%s2 + $0x8] sm:$0xff]
    %v156 = vld [vmem:[%s2 + $0x10] sm:$0xff]
    %v157 = vld [vmem:[%s2 + $0x18] sm:$0xff]
    %v158 = vld [vmem:[%s3] sm:$0xff]
    %v159 = vld [vmem:[%s3 + $0x8] sm:$0xff]
    %v160 = vld [vmem:[%s3 + $0x10] sm:$0xff]
    %v161 = vld [vmem:[%s3 + $0x18] sm:$0xff]
    %vm162 = vcmask 130048
    %v163 = vsel %vm162, %v136, 0.0
    %164 = vadd.xlane.f32.xlu0 %v163
    %v165 = vpop.xlane.xlu0 %164
    %v166 = vsel %vm162, %v141, 0.0
    %167 = vadd.xlane.f32.xlu0 %v166
    %v168 = vpop.xlane.xlu0 %167
    %v169 = vsel %vm162, %v146, 0.0
    %170 = vadd.xlane.f32.xlu0 %v169
    %v171 = vpop.xlane.xlu0 %170
    %v172 = vsel %vm162, %v151, 0.0
    %173 = vadd.xlane.f32.xlu0 %v172
    %v174 = vpop.xlane.xlu0 %173
    %v175 = vmul.f32 %v136, %v136
    %v176 = vmul.f32 %v141, %v141
    %v177 = vmul.f32 %v146, %v146
    %v178 = vmul.f32 %v151, %v151
    %v179 = vsel %vm162, %v175, 0.0
    %180 = vadd.xlane.f32.xlu0 %v179
    %v181 = vpop.xlane.xlu0 %180
    %v182 = vsel %vm162, %v176, 0.0
    %183 = vadd.xlane.f32.xlu0 %v182
    %v184 = vpop.xlane.xlu0 %183
    %v185 = vsel %vm162, %v177, 0.0
    %186 = vadd.xlane.f32.xlu0 %v185
    %v187 = vpop.xlane.xlu0 %186
    %v188 = vsel %vm162, %v178, 0.0
    %189 = vadd.xlane.f32.xlu0 %v188
    %v190 = vpop.xlane.xlu0 %189
    %v191 = vmul.f32 %v165, 0.0625
    %v192 = vmul.f32 %v168, 0.0625
    %v193 = vmul.f32 %v171, 0.0625
    %v194 = vmul.f32 %v174, 0.0625
    %v195 = vmul.f32 %v181, 0.0625
    %v196 = vmul.f32 %v184, 0.0625
    %v197 = vmul.f32 %v187, 0.0625
    %v198 = vmul.f32 %v190, 0.0625
    %v199 = vmul.f32 %v191, %v191
    %v200 = vmul.f32 %v192, %v192
    %v201 = vmul.f32 %v193, %v193
    %v202 = vmul.f32 %v194, %v194
    %v203 = vsub.f32 %v195, %v199
    %v204 = vsub.f32 %v196, %v200
    %v205 = vsub.f32 %v197, %v201
    %v206 = vsub.f32 %v198, %v202
    %v207 = vmax.f32 %v203, 0.0
    %v208 = vmax.f32 %v204, 0.0
    %v209 = vmax.f32 %v205, 0.0
    %v210 = vmax.f32 %v206, 0.0
    %v211 = vadd.f32 %v207, 1e-05
    %v212 = vadd.f32 %v208, 1e-05
    %v213 = vadd.f32 %v209, 1e-05
    %v214 = vadd.f32 %v210, 1e-05
    %v215 = vrsqrt.pop %v211
    %v216 = vrsqrt.pop %v212
    %v217 = vrsqrt.pop %v213
    %v218 = vrsqrt.pop %v214
    %v219 = vmul.f32 %v154, %v215
    %v220 = vmul.f32 %v155, %v216
    %v221 = vmul.f32 %v156, %v217
    %v222 = vmul.f32 %v157, %v218
    %v223 = vmul.f32 %v191, %v219
    %v224 = vmul.f32 %v192, %v220
    %v225 = vmul.f32 %v193, %v221
    %v226 = vmul.f32 %v194, %v222
    %v227 = vsub.f32 %v158, %v223
    %v228 = vsub.f32 %v159, %v224
    %v229 = vsub.f32 %v160, %v225
    %v230 = vsub.f32 %v161, %v226
    %232 = vset.pattern.permute.xlu0 0
    %233 = vperm.xlu0 %232, %v219
    %v234 = vpop.permute.xlu0 %233
    %237 = vset.pattern.permute.xlu0 0
    %238 = vperm.xlu0 %237, %v220
    %v239 = vpop.permute.xlu0 %238
    %242 = vset.pattern.permute.xlu0 0
    %243 = vperm.xlu0 %242, %v221
    %v244 = vpop.permute.xlu0 %243
    %247 = vset.pattern.permute.xlu0 0
    %248 = vperm.xlu0 %247, %v222
    %v249 = vpop.permute.xlu0 %248
    %v251 = vmul.f32 %v136, %v234
    %v252 = vmul.f32 %v141, %v239
    %v253 = vmul.f32 %v146, %v244
    %v254 = vmul.f32 %v151, %v249
    %256 = vset.pattern.permute.xlu0 0
    %257 = vperm.xlu0 %256, %v227
    %v258 = vpop.permute.xlu0 %257
    %261 = vset.pattern.permute.xlu0 0
    %262 = vperm.xlu0 %261, %v228
    %v263 = vpop.permute.xlu0 %262
    %266 = vset.pattern.permute.xlu0 0
    %267 = vperm.xlu0 %266, %v229
    %v268 = vpop.permute.xlu0 %267
    %271 = vset.pattern.permute.xlu0 0
    %272 = vperm.xlu0 %271, %v230
    %v273 = vpop.permute.xlu0 %272
    %v275 = vadd.f32 %v251, %v258
    %v276 = vadd.f32 %v252, %v263
    %v277 = vadd.f32 %v253, %v268
    %v278 = vadd.f32 %v254, %v273
    %v279 = vmax.f32 %v275, 0.0
    %v280 = vmax.f32 %v276, 0.0
    %v281 = vmax.f32 %v277, 0.0
    %v282 = vmax.f32 %v278, 0.0
    %283 = vxpose.xlu0.b32.start [1/16] %v279, 128
    %284 = vxpose.xlu0.b32.cont [2/16] %v280, 128
    %285 = vxpose.xlu0.b32.cont [3/16] %v281, 128
    %286 = vxpose.xlu0.b32.cont [4/16] %v282, 128
    %287 = vxpose.xlu0.b32.cont [5/16] 0.0, 128
    %288 = vxpose.xlu0.b32.cont [6/16] 0.0, 128
    %289 = vxpose.xlu0.b32.cont [7/16] 0.0, 128
    %290 = vxpose.xlu0.b32.cont [8/16] 0.0, 128
    %291 = vxpose.xlu0.b32.cont [9/16] 0.0, 128
    %292 = vxpose.xlu0.b32.cont [10/16] 0.0, 128
    %293 = vxpose.xlu0.b32.cont [11/16] 0.0, 128
    %294 = vxpose.xlu0.b32.cont [12/16] 0.0, 128
    %295 = vxpose.xlu0.b32.cont [13/16] 0.0, 128
    %296 = vxpose.xlu0.b32.cont [14/16] 0.0, 128
    %297 = vxpose.xlu0.b32.cont [15/16] 0.0, 128
    %298 = vxpose.xlu0.b32.end [16/16] 0.0, 128
    %v299 = vpop.trf.xlu0
    %v300 = vpop.trf.xlu0
    %v301 = vpop.trf.xlu0
    %v302 = vpop.trf.xlu0
    %v303 = vpop.trf.xlu0
    %v304 = vpop.trf.xlu0
    %v305 = vpop.trf.xlu0
    %v306 = vpop.trf.xlu0
    %v307 = vpop.trf.xlu0
    %v308 = vpop.trf.xlu0
    %v309 = vpop.trf.xlu0
    %v310 = vpop.trf.xlu0
    %v311 = vpop.trf.xlu0
    %v312 = vpop.trf.xlu0
    %v313 = vpop.trf.xlu0
    %v314 = vpop.trf.xlu0
    %315 = vst.msk [vmem:[#allocation2] sm:$0xff] %vm50, %v299
    %316 = vst.msk [vmem:[#allocation2 + $0x8] sm:$0xff] %vm50, %v300
    %v317 = vld [vmem:[%s4] sm:$0xff]
    %v318 = vld [vmem:[%s4 + $0x8] sm:$0xff]
    %v320 = vsel %vm50, %v317, 0
    %v323 = vsel %vm50, %v318, 0
    %325 = vmatprep.subr.mxu0 0.0
    %326 = vmatpush1.msra.mxu0 %v279
    %327 = vmatprep.subr.mxu0 0.0
    %328 = vmatpush1.msra.mxu0 %v280
    %329 = vmatprep.subr.mxu0 0.0
    %330 = vmatpush1.msra.mxu0 %v281
    %331 = vmatprep.subr.mxu0 0.0
    %332 = vmatpush1.msra.mxu0 %v282
    %333 = vmatprep.subr.mxu0 0.0
    %334 = vmatpush1.msra.mxu0 0.0
    %335 = vmatprep.subr.mxu0 0.0
    %336 = vmatpush1.msra.mxu0 0.0
    %337 = vmatprep.subr.mxu0 0.0
    %338 = vmatpush1.msra.mxu0 0.0
    %339 = vmatprep.subr.mxu0 0.0
    %340 = vmatpush1.msra.mxu0 0.0
    %341 = vmatprep.subr.mxu0 0.0
    %342 = vmatpush1.msra.mxu0 0.0
    %343 = vmatprep.subr.mxu0 0.0
    %344 = vmatpush1.msra.mxu0 0.0
    %345 = vmatprep.subr.mxu0 0.0
    %346 = vmatpush1.msra.mxu0 0.0
    %347 = vmatprep.subr.mxu0 0.0
    %348 = vmatpush1.msra.mxu0 0.0
    %349 = vmatprep.subr.mxu0 0.0
    %350 = vmatpush1.msra.mxu0 0.0
    %351 = vmatprep.subr.mxu0 0.0
    %352 = vmatpush1.msra.mxu0 0.0
    %353 = vmatprep.subr.mxu0 0.0
    %354 = vmatpush1.msra.mxu0 0.0
    %355 = vmatprep.subr.mxu0 0.0
    %356 = vmatpush1.msra.mxu0 0.0
    %357 = vmatprep.subr.mxu0 0.0
    %358 = vmatpush1.msra.mxu0 0.0
    %359 = vmatprep.subr.mxu0 0.0
    %360 = vmatpush1.msra.mxu0 0.0
    %361 = vmatprep.subr.mxu0 0.0
    %362 = vmatpush1.msra.mxu0 0.0
    %363 = vmatprep.subr.mxu0 0.0
    %364 = vmatpush1.msra.mxu0 0.0
    %365 = vmatprep.subr.mxu0 0.0
    %366 = vmatpush1.msra.mxu0 0.0
    %367 = vmatprep.subr.mxu0 0.0
    %368 = vmatpush1.msra.mxu0 0.0
    %369 = vmatprep.subr.mxu0 0.0
    %370 = vmatpush1.msra.mxu0 0.0
    %371 = vmatprep.subr.mxu0 0.0
    %372 = vmatpush1.msra.mxu0 0.0
    %373 = vmatprep.subr.mxu0 0.0
    %374 = vmatpush1.msra.mxu0 0.0
    %375 = vmatprep.subr.mxu0 0.0
    %376 = vmatpush1.msra.mxu0 0.0
    %377 = vmatprep.subr.mxu0 0.0
    %378 = vmatpush1.msra.mxu0 0.0
    %379 = vmatprep.subr.mxu0 0.0
    %380 = vmatpush1.msra.mxu0 0.0
    %381 = vmatprep.subr.mxu0 0.0
    %382 = vmatpush1.msra.mxu0 0.0
    %383 = vmatprep.subr.mxu0 0.0
    %384 = vmatpush1.msra.mxu0 0.0
    %385 = vmatprep.subr.mxu0 0.0
    %386 = vmatpush1.msra.mxu0 0.0
    %387 = vmatprep.subr.mxu0 0.0
    %388 = vmatpush1.msra.mxu0 0.0
    %389 = vmatprep.mubr.f32.mxu0 0.0
    %390 = vmatmul.mubr.f32.gmra.mrb[0].mxu0 %v320
    %v391 = vpop.f32.mrb[0].mxu0
    %v392 = vadd.f32 0.0, %v391
    %v393 = vpop.f32.mrb[0].mxu0
    %394 = vmatprep.mubr.f32.mxu0 0.0
    %395 = vmatmul.mubr.f32.gmra.mrb[0].mxu0 %v323
    %v396 = vpop.f32.mrb[0].mxu0
    %v397 = vadd.f32 0.0, %v396
    %v398 = vpop.f32.mrb[0].mxu0
    %399 = vdwg.mxu0
    %v400 = vld [vmem:[%s5] sm:$0xff]
    %v401 = vld [vmem:[%s5 + $0x8] sm:$0xff]
    %v402 = vld [vmem:[%s6] sm:$0xff]
    %v403 = vld [vmem:[%s6 + $0x8] sm:$0xff]
    %v404 = vsel %vm162, %v392, 0.0
    %405 = vadd.xlane.f32.xlu0 %v404
    %v406 = vpop.xlane.xlu0 %405
    %v407 = vsel %vm162, %v397, 0.0
    %408 = vadd.xlane.f32.xlu0 %v407
    %v409 = vpop.xlane.xlu0 %408
    %v410 = vmul.f32 %v392, %v392
    %v411 = vmul.f32 %v397, %v397
    %v412 = vsel %vm162, %v410, 0.0
    %413 = vadd.xlane.f32.xlu0 %v412
    %v414 = vpop.xlane.xlu0 %413
    %v415 = vsel %vm162, %v411, 0.0
    %416 = vadd.xlane.f32.xlu0 %v415
    %v417 = vpop.xlane.xlu0 %416
    %v418 = vmul.f32 %v406, 0.0625
    %v419 = vmul.f32 %v409, 0.0625
    %v420 = vmul.f32 %v414, 0.0625
    %v421 = vmul.f32 %v417, 0.0625
    %v422 = vmul.f32 %v418, %v418
    %v423 = vmul.f32 %v419, %v419
    %v424 = vsub.f32 %v420, %v422
    %v425 = vsub.f32 %v421, %v423
    %v426 = vmax.f32 %v424, 0.0
    %v427 = vmax.f32 %v425, 0.0
    %v428 = vadd.f32 %v426, 1e-05
    %v429 = vadd.f32 %v427, 1e-05
    %v430 = vrsqrt.pop %v428
    %v431 = vrsqrt.pop %v429
    %v432 = vmul.f32 %v400, %v430
    %v433 = vmul.f32 %v401, %v431
    %v434 = vmul.f32 %v418, %v432
    %v435 = vmul.f32 %v419, %v433
    %v436 = vsub.f32 %v402, %v434
    %v437 = vsub.f32 %v403, %v435
    %439 = vset.pattern.permute.xlu0 0
    %440 = vperm.xlu0 %439, %v432
    %v441 = vpop.permute.xlu0 %440
    %444 = vset.pattern.permute.xlu0 0
    %445 = vperm.xlu0 %444, %v433
    %v446 = vpop.permute.xlu0 %445
    %v448 = vmul.f32 %v392, %v441
    %v449 = vmul.f32 %v397, %v446
    %451 = vset.pattern.permute.xlu0 0
    %452 = vperm.xlu0 %451, %v436
    %v453 = vpop.permute.xlu0 %452
    %456 = vset.pattern.permute.xlu0 0
    %457 = vperm.xlu0 %456, %v437
    %v458 = vpop.permute.xlu0 %457
    %v460 = vadd.f32 %v448, %v453
    %v461 = vadd.f32 %v449, %v458
    %v462 = vmax.f32 %v460, 0.0
    %v463 = vmax.f32 %v461, 0.0
    %464 = vxpose.xlu0.b32.start [1/16] %v462, 128
    %465 = vxpose.xlu0.b32.cont [2/16] %v463, 128
    %466 = vxpose.xlu0.b32.cont [3/16] 0.0, 128
    %467 = vxpose.xlu0.b32.cont [4/16] 0.0, 128
    %468 = vxpose.xlu0.b32.cont [5/16] 0.0, 128
    %469 = vxpose.xlu0.b32.cont [6/16] 0.0, 128
    %470 = vxpose.xlu0.b32.cont [7/16] 0.0, 128
    %471 = vxpose.xlu0.b32.cont [8/16] 0.0, 128
    %472 = vxpose.xlu0.b32.cont [9/16] 0.0, 128
    %473 = vxpose.xlu0.b32.cont [10/16] 0.0, 128
    %474 = vxpose.xlu0.b32.cont [11/16] 0.0, 128
    %475 = vxpose.xlu0.b32.cont [12/16] 0.0, 128
    %476 = vxpose.xlu0.b32.cont [13/16] 0.0, 128
    %477 = vxpose.xlu0.b32.cont [14/16] 0.0, 128
    %478 = vxpose.xlu0.b32.cont [15/16] 0.0, 128
    %479 = vxpose.xlu0.b32.end [16/16] 0.0, 128
    %v480 = vpop.trf.xlu0
    %v481 = vpop.trf.xlu0
    %v482 = vpop.trf.xlu0
    %v483 = vpop.trf.xlu0
    %v484 = vpop.trf.xlu0
    %v485 = vpop.trf.xlu0
    %v486 = vpop.trf.xlu0
    %v487 = vpop.trf.xlu0
    %v488 = vpop.trf.xlu0
    %v489 = vpop.trf.xlu0
    %v490 = vpop.trf.xlu0
    %v491 = vpop.trf.xlu0
    %v492 = vpop.trf.xlu0
    %v493 = vpop.trf.xlu0
    %v494 = vpop.trf.xlu0
    %v495 = vpop.trf.xlu0
    %496 = vst.msk [vmem:[#allocation4] sm:$0xff] %vm162, %v480
    %497 = vst.msk [vmem:[#allocation4 + $0x8] sm:$0xff] %vm162, %v481
    %v498 = vld [vmem:[%s7] sm:$0xff]
    %v500 = vsel %vm162, %v498, 0
    %502 = vmatprep.subr.mxu0 0.0
    %503 = vmatpush1.msra.mxu0 %v462
    %504 = vmatprep.subr.mxu0 0.0
    %505 = vmatpush1.msra.mxu0 %v463
    %506 = vmatprep.subr.mxu0 0.0
    %507 = vmatpush1.msra.mxu0 0.0
    %508 = vmatprep.subr.mxu0 0.0
    %509 = vmatpush1.msra.mxu0 0.0
    %510 = vmatprep.subr.mxu0 0.0
    %511 = vmatpush1.msra.mxu0 0.0
    %512 = vmatprep.subr.mxu0 0.0
    %513 = vmatpush1.msra.mxu0 0.0
    %514 = vmatprep.subr.mxu0 0.0
    %515 = vmatpush1.msra.mxu0 0.0
    %516 = vmatprep.subr.mxu0 0.0
    %517 = vmatpush1.msra.mxu0 0.0
    %518 = vmatprep.subr.mxu0 0.0
    %519 = vmatpush1.msra.mxu0 0.0
    %520 = vmatprep.subr.mxu0 0.0
    %521 = vmatpush1.msra.mxu0 0.0
    %522 = vmatprep.subr.mxu0 0.0
    %523 = vmatpush1.msra.mxu0 0.0
    %524 = vmatprep.subr.mxu0 0.0
    %525 = vmatpush1.msra.mxu0 0.0
    %526 = vmatprep.subr.mxu0 0.0
    %527 = vmatpush1.msra.mxu0 0.0
    %528 = vmatprep.subr.mxu0 0.0
    %529 = vmatpush1.msra.mxu0 0.0
    %530 = vmatprep.subr.mxu0 0.0
    %531 = vmatpush1.msra.mxu0 0.0
    %532 = vmatprep.subr.mxu0 0.0
    %533 = vmatpush1.msra.mxu0 0.0
    %534 = vmatprep.subr.mxu0 0.0
    %535 = vmatpush1.msra.mxu0 0.0
    %536 = vmatprep.subr.mxu0 0.0
    %537 = vmatpush1.msra.mxu0 0.0
    %538 = vmatprep.subr.mxu0 0.0
    %539 = vmatpush1.msra.mxu0 0.0
    %540 = vmatprep.subr.mxu0 0.0
    %541 = vmatpush1.msra.mxu0 0.0
    %542 = vmatprep.subr.mxu0 0.0
    %543 = vmatpush1.msra.mxu0 0.0
    %544 = vmatprep.subr.mxu0 0.0
    %545 = vmatpush1.msra.mxu0 0.0
    %546 = vmatprep.subr.mxu0 0.0
    %547 = vmatpush1.msra.mxu0 0.0
    %548 = vmatprep.subr.mxu0 0.0
    %549 = vmatpush1.msra.mxu0 0.0
    %550 = vmatprep.subr.mxu0 0.0
    %551 = vmatpush1.msra.mxu0 0.0
    %552 = vmatprep.subr.mxu0 0.0
    %553 = vmatpush1.msra.mxu0 0.0
    %554 = vmatprep.subr.mxu0 0.0
    %555 = vmatpush1.msra.mxu0 0.0
    %556 = vmatprep.subr.mxu0 0.0
    %557 = vmatpush1.msra.mxu0 0.0
    %558 = vmatprep.subr.mxu0 0.0
    %559 = vmatpush1.msra.mxu0 0.0
    %560 = vmatprep.subr.mxu0 0.0
    %561 = vmatpush1.msra.mxu0 0.0
    %562 = vmatprep.subr.mxu0 0.0
    %563 = vmatpush1.msra.mxu0 0.0
    %564 = vmatprep.subr.mxu0 0.0
    %565 = vmatpush1.msra.mxu0 0.0
    %566 = vmatprep.mubr.f32.mxu0 0.0
    %567 = vmatmul.mubr.f32.gmra.mrb[0].mxu0 %v500
    %v568 = vpop.f32.mrb[0].mxu0
    %v569 = vadd.f32 0.0, %v568
    %v570 = vpop.f32.mrb[0].mxu0
    %571 = vdwg.mxu0
    %v572 = vld [vmem:[%s8] sm:$0xff]
    %v573 = vld [vmem:[%s9] sm:$0xff]
    %v574 = vsel %vm162, %v569, 0.0
    %575 = vadd.xlane.f32.xlu0 %v574
    %v576 = vpop.xlane.xlu0 %575
    %v577 = vmul.f32 %v569, %v569
    %v578 = vsel %vm162, %v577, 0.0
    %579 = vadd.xlane.f32.xlu0 %v578
    %v580 = vpop.xlane.xlu0 %579
    %v581 = vmul.f32 %v576, 0.0625
    %v582 = vmul.f32 %v580, 0.0625
    %v583 = vmul.f32 %v581, %v581
    %v584 = vsub.f32 %v582, %v583
    %v585 = vmax.f32 %v584, 0.0
    %v586 = vadd.f32 %v585, 1e-05
    %v587 = vrsqrt.pop %v586
    %v588 = vmul.f32 %v572, %v587
    %v589 = vmul.f32 %v581, %v588
    %v590 = vsub.f32 %v573, %v589
    %592 = vset.pattern.permute.xlu0 0
    %593 = vperm.xlu0 %592, %v588
    %v594 = vpop.permute.xlu0 %593
    %v596 = vmul.f32 %v569, %v594
    %598 = vset.pattern.permute.xlu0 0
    %599 = vperm.xlu0 %598, %v590
    %v600 = vpop.permute.xlu0 %599
    %v602 = vadd.f32 %v596, %v600
    %v603 = vmax.f32 %v602, 0.0
    %604 = vxpose.xlu0.b32.start [1/16] %v603, 128
    %605 = vxpose.xlu0.b32.cont [2/16] 0.0, 128
    %606 = vxpose.xlu0.b32.cont [3/16] 0.0, 128
    %607 = vxpose.xlu0.b32.cont [4/16] 0.0, 128
    %608 = vxpose.xlu0.b32.cont [5/16] 0.0, 128
    %609 = vxpose.xlu0.b32.cont [6/16] 0.0, 128
    %610 = vxpose.xlu0.b32.cont [7/16] 0.0, 128
    %611 = vxpose.xlu0.b32.cont [8/16] 0.0, 128
    %612 = vxpose.xlu0.b32.cont [9/16] 0.0, 128
    %613 = vxpose.xlu0.b32.cont [10/16] 0.0, 128
    %614 = vxpose.xlu0.b32.cont [11/16] 0.0, 128
    %615 = vxpose.xlu0.b32.cont [12/16] 0.0, 128
    %616 = vxpose.xlu0.b32.cont [13/16] 0.0, 128
    %617 = vxpose.xlu0.b32.cont [14/16] 0.0, 128
    %618 = vxpose.xlu0.b32.cont [15/16] 0.0, 128
    %619 = vxpose.xlu0.b32.end [16/16] 0.0, 128
    %v620 = vpop.trf.xlu0
    %v621 = vpop.trf.xlu0
    %v622 = vpop.trf.xlu0
    %v623 = vpop.trf.xlu0
    %v624 = vpop.trf.xlu0
    %v625 = vpop.trf.xlu0
    %v626 = vpop.trf.xlu0
    %v627 = vpop.trf.xlu0
    %v628 = vpop.trf.xlu0
    %v629 = vpop.trf.xlu0
    %v630 = vpop.trf.xlu0
    %v631 = vpop.trf.xlu0
    %v632 = vpop.trf.xlu0
    %v633 = vpop.trf.xlu0
    %v634 = vpop.trf.xlu0
    %v635 = vpop.trf.xlu0
    %vm636 = vcmask 64512
    %637 = vst.msk [vmem:[%s13] sm:$0xff] %vm636, %v620
    %638 = vst.msk [vmem:[%s13 + $0x8] sm:$0xff] %vm636, %v621
    %v639 = vld [vmem:[%s10] sm:$0xff]
    %v641 = vsel %vm636, %v639, 0
    %643 = vmatprep.subr.mxu0 0.0
    %644 = vmatpush1.msra.mxu0 %v603
    %645 = vmatprep.subr.mxu0 0.0
    %646 = vmatpush1.msra.mxu0 0.0
    %647 = vmatprep.subr.mxu0 0.0
    %648 = vmatpush1.msra.mxu0 0.0
    %649 = vmatprep.subr.mxu0 0.0
    %650 = vmatpush1.msra.mxu0 0.0
    %651 = vmatprep.subr.mxu0 0.0
    %652 = vmatpush1.msra.mxu0 0.0
    %653 = vmatprep.subr.mxu0 0.0
    %654 = vmatpush1.msra.mxu0 0.0
    %655 = vmatprep.subr.mxu0 0.0
    %656 = vmatpush1.msra.mxu0 0.0
    %657 = vmatprep.subr.mxu0 0.0
    %658 = vmatpush1.msra.mxu0 0.0
    %659 = vmatprep.subr.mxu0 0.0
    %660 = vmatpush1.msra.mxu0 0.0
    %661 = vmatprep.subr.mxu0 0.0
    %662 = vmatpush1.msra.mxu0 0.0
    %663 = vmatprep.subr.mxu0 0.0
    %664 = vmatpush1.msra.mxu0 0.0
    %665 = vmatprep.subr.mxu0 0.0
    %666 = vmatpush1.msra.mxu0 0.0
    %667 = vmatprep.subr.mxu0 0.0
    %668 = vmatpush1.msra.mxu0 0.0
    %669 = vmatprep.subr.mxu0 0.0
    %670 = vmatpush1.msra.mxu0 0.0
    %671 = vmatprep.subr.mxu0 0.0
    %672 = vmatpush1.msra.mxu0 0.0
    %673 = vmatprep.subr.mxu0 0.0
    %674 = vmatpush1.msra.mxu0 0.0
    %675 = vmatprep.subr.mxu0 0.0
    %676 = vmatpush1.msra.mxu0 0.0
    %677 = vmatprep.subr.mxu0 0.0
    %678 = vmatpush1.msra.mxu0 0.0
    %679 = vmatprep.subr.mxu0 0.0
    %680 = vmatpush1.msra.mxu0 0.0
    %681 = vmatprep.subr.mxu0 0.0
    %682 = vmatpush1.msra.mxu0 0.0
    %683 = vmatprep.subr.mxu0 0.0
    %684 = vmatpush1.msra.mxu0 0.0
    %685 = vmatprep.subr.mxu0 0.0
    %686 = vmatpush1.msra.mxu0 0.0
    %687 = vmatprep.subr.mxu0 0.0
    %688 = vmatpush1.msra.mxu0 0.0
    %689 = vmatprep.subr.mxu0 0.0
    %690 = vmatpush1.msra.mxu0 0.0
    %691 = vmatprep.subr.mxu0 0.0
    %692 = vmatpush1.msra.mxu0 0.0
    %693 = vmatprep.subr.mxu0 0.0
    %694 = vmatpush1.msra.mxu0 0.0
    %695 = vmatprep.subr.mxu0 0.0
    %696 = vmatpush1.msra.mxu0 0.0
    %697 = vmatprep.subr.mxu0 0.0
    %698 = vmatpush1.msra.mxu0 0.0
    %699 = vmatprep.subr.mxu0 0.0
    %700 = vmatpush1.msra.mxu0 0.0
    %701 = vmatprep.subr.mxu0 0.0
    %702 = vmatpush1.msra.mxu0 0.0
    %703 = vmatprep.subr.mxu0 0.0
    %704 = vmatpush1.msra.mxu0 0.0
    %705 = vmatprep.subr.mxu0 0.0
    %706 = vmatpush1.msra.mxu0 0.0
    %707 = vmatprep.mubr.f32.mxu0 0.0
    %708 = vmatmul.mubr.f32.gmra.mrb[0].mxu0 %v641
    %v709 = vpop.f32.mrb[0].mxu0
    %v710 = vadd.f32 0.0, %v709
    %v711 = vpop.f32.mrb[0].mxu0
    %712 = vdwg.mxu0
    %v713 = vsel %vm162, %v710, 0.0
    %714 = vadd.xlane.f32.xlu0 %v713
    %v715 = vpop.xlane.xlu0 %714
    %v716 = vmul.f32 %v710, %v710
    %v717 = vsel %vm162, %v716, 0.0
    %718 = vadd.xlane.f32.xlu0 %v717
    %v719 = vpop.xlane.xlu0 %718
    %v720 = vmul.f32 %v715, 0.0625
    %v721 = vmul.f32 %v719, 0.0625
    %v722 = vmul.f32 %v720, %v720
    %v723 = vsub.f32 %v721, %v722
    %v724 = vmax.f32 %v723, 0.0
    %v725 = vsub.f32 %v710, %v720
    %v726 = vadd.f32 %v724, 1e-05
    %v727 = vrsqrt.pop %v726
    %v728 = vmul.f32 %v725, %v727
    %v729 = vmul.f32 %v728, %v728
    %v730 = vsel %vm162, %v729, 0.0
    %v731 = vrot.slane %v730, 4
    %v732 = vadd.f32 %v730, %v731
    %v733 = vrot.slane %v732, 2
    %v734 = vadd.f32 %v732, %v733
    %v735 = vrot.slane %v734, 1
    %v736 = vadd.f32 %v734, %v735
    %v737 = vmax.f32 %v736, 1e-24
    %v738 = vrsqrt.pop %v737
    %v739 = vmul.f32 %v728, %v738
    %740 = vxpose.xlu0.b32.start [1/16] %v739, 128
    %741 = vxpose.xlu0.b32.cont [2/16] 0.0, 128
    %742 = vxpose.xlu0.b32.cont [3/16] 0.0, 128
    %743 = vxpose.xlu0.b32.cont [4/16] 0.0, 128
    %744 = vxpose.xlu0.b32.cont [5/16] 0.0, 128
    %745 = vxpose.xlu0.b32.cont [6/16] 0.0, 128
    %746 = vxpose.xlu0.b32.cont [7/16] 0.0, 128
    %747 = vxpose.xlu0.b32.cont [8/16] 0.0, 128
    %748 = vxpose.xlu0.b32.cont [9/16] 0.0, 128
    %749 = vxpose.xlu0.b32.cont [10/16] 0.0, 128
    %750 = vxpose.xlu0.b32.cont [11/16] 0.0, 128
    %751 = vxpose.xlu0.b32.cont [12/16] 0.0, 128
    %752 = vxpose.xlu0.b32.cont [13/16] 0.0, 128
    %753 = vxpose.xlu0.b32.cont [14/16] 0.0, 128
    %754 = vxpose.xlu0.b32.cont [15/16] 0.0, 128
    %755 = vxpose.xlu0.b32.end [16/16] 0.0, 128
    %v756 = vpop.trf.xlu0
    %v757 = vpop.trf.xlu0
    %v758 = vpop.trf.xlu0
    %v759 = vpop.trf.xlu0
    %v760 = vpop.trf.xlu0
    %v761 = vpop.trf.xlu0
    %v762 = vpop.trf.xlu0
    %v763 = vpop.trf.xlu0
    %v764 = vpop.trf.xlu0
    %v765 = vpop.trf.xlu0
    %v766 = vpop.trf.xlu0
    %v767 = vpop.trf.xlu0
    %v768 = vpop.trf.xlu0
    %v769 = vpop.trf.xlu0
    %v770 = vpop.trf.xlu0
    %v771 = vpop.trf.xlu0
    %772 = vst.msk [vmem:[%s14] sm:$0xff] %vm636, %v756
    %773 = vst.msk [vmem:[%s14 + $0x8] sm:$0xff] %vm636, %v757
    // Predicated region
    $region46: #{modified_network_forward.1} parent=1 // pred_check
      _
    $region47: #{modified_network_forward.1} parent=1 // pred_check_branch
      %775 = sbr.rel (0) target = $region49
    $region48: #{modified_network_forward.1} parent=1 // pred_region
      %s777 = ssub.s32 256, 256
      %778 = vsyncadd [#allocation3], %s777
      %s779 = sshll.u32 [#allocation2], 4
      %s780 = int_to_ptr.vmem [resolvable:$true] %s779
      %785 = dma.vmem_to_hbm [thread:$0]  %s780, 256, %s11, [#allocation3], 128, 128, 8
    $region49: #{modified_network_forward.1} parent=1 // pred_fallthru
      _
    // Predicated region
    $region50: #{modified_network_forward.1} parent=1 // pred_check
      _
    $region51: #{modified_network_forward.1} parent=1 // pred_check_branch
      %787 = sbr.rel (0) target = $region53
    $region52: #{modified_network_forward.1} parent=1 // pred_region
      %s789 = ssub.s32 256, 256
      %790 = vsyncadd [#allocation5], %s789
      %s791 = sshll.u32 [#allocation4], 4
      %s792 = int_to_ptr.vmem [resolvable:$true] %s791
      %797 = dma.vmem_to_hbm [thread:$0]  %s792, 256, %s12, [#allocation5], 128, 128, 8
    $region53: #{modified_network_forward.1} parent=1 // pred_fallthru
      _
    // Predicated region
    $region54: #{modified_network_forward.1} parent=1 // pred_check
      _
    $region55: #{modified_network_forward.1} parent=1 // pred_check_branch
      %799 = sbr.rel (0) target = $region57
    $region56: #{modified_network_forward.1} parent=1 // pred_region
      _
    $region57: #{modified_network_forward.1} parent=1 // pred_fallthru
      _
    // Predicated region
    $region58: #{modified_network_forward.1} parent=1 // pred_check
      _
    $region59: #{modified_network_forward.1} parent=1 // pred_check_branch
      %801 = sbr.rel (0) target = $region61
    $region60: #{modified_network_forward.1} parent=1 // pred_region
      _
    $region61: #{modified_network_forward.1} parent=1 // pred_fallthru
      _
    // Predicated region
    $region62: #{modified_network_forward.1} parent=1 // pred_check
      _
    $region63: #{modified_network_forward.1} parent=1 // pred_check_branch
      %803 = sbr.rel (0) target = $region65
    $region64: #{modified_network_forward.1} parent=1 // pred_region
      %804 = dma.done [#allocation3], 256
    $region65: #{modified_network_forward.1} parent=1 // pred_fallthru
      _
    // Predicated region
    $region66: #{modified_network_forward.1} parent=1 // pred_check
      _
    $region67: #{modified_network_forward.1} parent=1 // pred_check_branch
      %806 = sbr.rel (0) target = $region69
    $region68: #{modified_network_forward.1} parent=1 // pred_region
      %807 = dma.done [#allocation5], 256
    $region69: #{modified_network_forward.1} parent=1 // pred_fallthru
      _
    // Predicated region
    $region70: #{modified_network_forward.1} parent=1 // pred_check
      _
    $region71: #{modified_network_forward.1} parent=1 // pred_check_branch
      %809 = sbr.rel (0) target = $region73
    $region72: #{modified_network_forward.1} parent=1 // pred_region
      _
    $region73: #{modified_network_forward.1} parent=1 // pred_fallthru
      _
    // Predicated region
    $region74: #{modified_network_forward.1} parent=1 // pred_check
      _
    $region75: #{modified_network_forward.1} parent=1 // pred_check_branch
      %811 = sbr.rel (0) target = $region77
    $region76: #{modified_network_forward.1} parent=1 // pred_region
      _
    $region77: #{modified_network_forward.1} parent=1 // pred_fallthru
      _
    %812 = vsyncpa [#allocation3], 1
    %813 = vsyncpa [#allocation5], 1

</llo_original>
